<compile_context>
chip_gen: v7x
topology: tpu7x:2x2x1
jax: 0.10.0
libtpu: 0.0.40
codegen_flags: <defaults>
</compile_context>

<pallas_src>
import math
from functools import partial

import jax
import jax.numpy as jnp
from jax.experimental import pallas as pl
from jax.experimental.pallas import tpu as pltpu


def _round_up(n, m):
    return ((n + m - 1) // m) * m


# ----------------------------------------------------------------------------
# Kernel: fused GRU cell (single matmul) + fused actor/critic head
# ----------------------------------------------------------------------------
def _rac_kernel(
    xh_ref,       # (Bt, I_pad + H_pad)   [x | h], zero lane-padded
    w4_ref,       # (I_pad + H_pad, 4*H_pad)  gate blocks [s_r | s_z | gi_n | gh_n]
    b4_ref,       # (1, 4*H_pad)          [bir+bhr | biz+bhz | bin | bhn] (0-padded)
    whead_ref,    # (H_pad, P_pad)        [W_actor | W_critic | 0-pad]
    bhead_ref,    # (1, P_pad)
    head_ref,     # (Bt, P_pad)  out: [logits | value | 0-pad]   (lane-dense)
    hnew_ref,     # (Bt, H_pad)  out: new hidden state           (lane-dense)
    *, i_pad, h_pad,
):
    xh = xh_ref[...]
    h = xh[:, i_pad:i_pad + h_pad]            # vreg-aligned slice, no data movement

    # One fused gate matmul: (Bt, 4*H_pad) = [s_r | s_z | gi_n | gh_n].
    g = jnp.dot(xh, w4_ref[...], preferred_element_type=jnp.float32) + b4_ref[...]

    r = jax.nn.sigmoid(g[:, 0 * h_pad:1 * h_pad])
    z = jax.nn.sigmoid(g[:, 1 * h_pad:2 * h_pad])
    # b_hn is baked into the gh_n block, so it is correctly inside r * (.)
    n = jnp.tanh(g[:, 2 * h_pad:3 * h_pad] + r * g[:, 3 * h_pad:4 * h_pad])
    h_new = (1.0 - z) * n + z * h             # padded lanes stay exactly 0

    hnew_ref[...] = h_new
    # Single fused actor+critic matmul into a lane-dense output slab.
    head_ref[...] = (
        jnp.dot(h_new, whead_ref[...], preferred_element_type=jnp.float32)
        + bhead_ref[...]
    )


# ----------------------------------------------------------------------------
# Wrapper
# ----------------------------------------------------------------------------
def recurrent_actor_critic(x, hidden_state, packed):
    """Forward pass matching RecurrentActorCritic.forward.

    x:            (B, input_size)  float32
    hidden_state: (1, B, hidden)   float32
    returns: policy_logits (B, A), state_value (B, 1), hidden_state (1, B, H)
    """
    I = packed["input_size"]
    H = packed["hidden_size"]
    A = packed["num_actions"]
    I_pad = packed["i_pad"]
    H_pad = packed["h_pad"]
    P_pad = packed["p_pad"]
    K = I_pad + H_pad

    B = x.shape[0]
    h0 = hidden_state[0]                      # (B, H)

    # --- batch tiling ---------------------------------------------------
    # Sublane-pad to 8; once B_pad >= 16 force >= 2 tiles (v7x dual-TC) and
    # cap the tile at 512 rows (amortize per-grid-step overhead on v5e/v6e).
    B_pad = _round_up(B, 8)
    if B_pad >= 16:
        B_tile = min(512, _round_up((B_pad + 1) // 2, 8))
        B_pad = _round_up(B_pad, B_tile)
    else:
        B_tile = B_pad
    n_tiles = B_pad // B_tile

    # --- lane-pad x / h and fuse into one [x | h] activation slab --------
    xp = jnp.zeros((B_pad, I_pad), jnp.float32).at[:B, :I].set(x)
    hp = jnp.zeros((B_pad, H_pad), jnp.float32).at[:B, :H].set(h0)
    xh = jnp.concatenate([xp, hp], axis=1)    # (B_pad, I_pad + H_pad)

    in_specs = [
        pl.BlockSpec((B_tile, K), lambda i: (i, 0)),            # xh
        pl.BlockSpec((K, 4 * H_pad), lambda i: (0, 0)),         # W4   (resident)
        pl.BlockSpec((1, 4 * H_pad), lambda i: (0, 0)),         # b4
        pl.BlockSpec((H_pad, P_pad), lambda i: (0, 0)),         # W_head
        pl.BlockSpec((1, P_pad), lambda i: (0, 0)),             # b_head
    ]
    out_specs = (
        pl.BlockSpec((B_tile, P_pad), lambda i: (i, 0)),        # head slab
        pl.BlockSpec((B_tile, H_pad), lambda i: (i, 0)),        # new hidden
    )

    head, h_new = pl.pallas_call(
        partial(_rac_kernel, i_pad=I_pad, h_pad=H_pad),
        out_shape=(
            jax.ShapeDtypeStruct((B_pad, P_pad), jnp.float32),
            jax.ShapeDtypeStruct((B_pad, H_pad), jnp.float32),
        ),
        grid=(n_tiles,),
        in_specs=in_specs,
        out_specs=out_specs,
        compiler_params=pltpu.CompilerParams(
            dimension_semantics=("parallel",),
        ),
    )(xh, packed["w4"], packed["b4"], packed["whead"], packed["bhead"])

    logits = head[:B, :A]
    value = head[:B, A:A + 1]
    h_out = h_new[:B, :H][None, :, :]         # back to (1, B, H)
    return logits, value, h_out


# ----------------------------------------------------------------------------
# Parameter init (mirrors nn.GRU / nn.Linear shapes & init range) + packing
# ----------------------------------------------------------------------------
def init_params(key, input_size, hidden_size, num_actions):
    H = hidden_size
    k = 1.0 / math.sqrt(H)
    keys = jax.random.split(key, 8)

    # PyTorch GRU: weight_ih_l0 (3H, I), weight_hh_l0 (3H, H), biases (3H,),
    # gate order [r, z, n].
    w_ih = jax.random.uniform(keys[0], (3 * H, input_size), minval=-k, maxval=k,
                              dtype=jnp.float32)
    w_hh = jax.random.uniform(keys[1], (3 * H, H), minval=-k, maxval=k,
                              dtype=jnp.float32)
    b_ih = jax.random.uniform(keys[2], (3 * H,), minval=-k, maxval=k,
                              dtype=jnp.float32)
    b_hh = jax.random.uniform(keys[3], (3 * H,), minval=-k, maxval=k,
                              dtype=jnp.float32)

    # Linear heads: weight (out, in), bias (out,)
    wa = jax.random.uniform(keys[4], (num_actions, H), minval=-k, maxval=k,
                            dtype=jnp.float32)
    ba = jax.random.uniform(keys[5], (num_actions,), minval=-k, maxval=k,
                            dtype=jnp.float32)
    wc = jax.random.uniform(keys[6], (1, H), minval=-k, maxval=k,
                            dtype=jnp.float32)
    bc = jax.random.uniform(keys[7], (1,), minval=-k, maxval=k,
                            dtype=jnp.float32)

    return dict(
        wir=w_ih[:H], wiz=w_ih[H:2 * H], win=w_ih[2 * H:],
        whr=w_hh[:H], whz=w_hh[H:2 * H], whn=w_hh[2 * H:],
        bir=b_ih[:H], biz=b_ih[H:2 * H], bin=b_ih[2 * H:],
        bhr=b_hh[:H], bhz=b_hh[H:2 * H], bhn=b_hh[2 * H:],
        wa=wa, ba=ba, wc=wc, bc=bc,
    )


def pack_params(p, input_size, hidden_size, num_actions):
    """Fuse / transpose / 128-lane-block-pad the PyTorch-layout params."""
    I, H, A = input_size, hidden_size, num_actions
    I_pad = _round_up(I, 128)
    H_pad = _round_up(H, 128)
    P_pad = _round_up(A + 1, 128)

    # Single fused gate weight W4:(I_pad+H_pad, 4*H_pad).
    # Rows [0:I] multiply x, rows [I_pad:I_pad+H] multiply h.
    # Column blocks (each H_pad lanes): [ s_r | s_z | gi_n | gh_n ].
    w4 = jnp.zeros((I_pad + H_pad, 4 * H_pad), jnp.float32)
    w4 = w4.at[0:I, 0 * H_pad:0 * H_pad + H].set(p["wir"].T)
    w4 = w4.at[I_pad:I_pad + H, 0 * H_pad:0 * H_pad + H].set(p["whr"].T)
    w4 = w4.at[0:I, 1 * H_pad:1 * H_pad + H].set(p["wiz"].T)
    w4 = w4.at[I_pad:I_pad + H, 1 * H_pad:1 * H_pad + H].set(p["whz"].T)
    w4 = w4.at[0:I, 2 * H_pad:2 * H_pad + H].set(p["win"].T)
    w4 = w4.at[I_pad:I_pad + H, 3 * H_pad:3 * H_pad + H].set(p["whn"].T)

    def pad_h(v):
        return jnp.pad(v, (0, H_pad - H))

    # Padded columns are exactly zero so padded hidden lanes stay zero.
    b4 = jnp.concatenate([
        pad_h(p["bir"] + p["bhr"]),
        pad_h(p["biz"] + p["bhz"]),
        pad_h(p["bin"]),
        pad_h(p["bhn"]),
    ])[None, :]                                                  # (1, 4*H_pad)

    # Fused actor + critic head: columns [0:A] actor, [A] critic, rest 0-pad.
    whead = jnp.zeros((H_pad, P_pad), jnp.float32)
    whead = whead.at[0:H, 0:A].set(p["wa"].T)
    whead = whead.at[0:H, A:A + 1].set(p["wc"].T)
    bhead = jnp.pad(jnp.concatenate([p["ba"], p["bc"]]), (0, P_pad - (A + 1)))[None, :]

    return dict(w4=w4, b4=b4, whead=whead, bhead=bhead,
                input_size=I, hidden_size=H, num_actions=A,
                i_pad=I_pad, h_pad=H_pad, p_pad=P_pad)


# Pure-JAX reference (PyTorch GRU-cell math, unpacked params).
def reference_forward(x, hidden_state, p):
    h = hidden_state[0]
    gi_r = x @ p["wir"].T + p["bir"]
    gi_z = x @ p["wiz"].T + p["biz"]
    gi_n = x @ p["win"].T + p["bin"]
    gh_r = h @ p["whr"].T + p["bhr"]
    gh_z = h @ p["whz"].T + p["bhz"]
    gh_n = h @ p["whn"].T + p["bhn"]
    r = jax.nn.sigmoid(gi_r + gh_r)
    z = jax.nn.sigmoid(gi_z + gh_z)
    n = jnp.tanh(gi_n + r * gh_n)
    h_new = (1.0 - z) * n + z * h
    logits = h_new @ p["wa"].T + p["ba"]
    value = h_new @ p["wc"].T + p["bc"]
    return logits, value, h_new[None, :, :]


if __name__ == "__main__":
    INPUT, HIDDEN, ACTIONS = 16, 32, 8

    key = jax.random.PRNGKey(0)
    k_p, k_x1, k_x2, k_h2 = jax.random.split(key, 4)
    raw_params = init_params(k_p, INPUT, HIDDEN, ACTIONS)
    packed = pack_params(raw_params, INPUT, HIDDEN, ACTIONS)

    # Case 1: B=8 (single tile), zero initial hidden state (init_hidden_state).
    B1 = 8
    x1 = jax.random.normal(k_x1, (B1, INPUT), dtype=jnp.float32)
    h1 = jnp.zeros((1, B1, HIDDEN), dtype=jnp.float32)
    logits1, value1, hout1 = recurrent_actor_critic(x1, h1, packed)

    # Case 2: B=24 (multi-tile path, non-zero hidden state).
    B2 = 24
    x2 = jax.random.normal(k_x2, (B2, INPUT), dtype=jnp.float32)
    h2 = 0.1 * jax.random.normal(k_h2, (1, B2, HIDDEN), dtype=jnp.float32)
    logits2, value2, hout2 = recurrent_actor_critic(x2, h2, packed)

    jax.block_until_ready((logits1, value1, hout1, logits2, value2, hout2))

    for (B, xb, hb, lo, va, ho) in (
        (B1, x1, h1, logits1, value1, hout1),
        (B2, x2, h2, logits2, value2, hout2),
    ):
        ref_lo, ref_va, ref_ho = reference_forward(xb, hb, raw_params)
        assert lo.shape == (B, ACTIONS)
        assert va.shape == (B, 1)
        assert ho.shape == (1, B, HIDDEN)
        assert jnp.allclose(lo, ref_lo, atol=1e-5, rtol=1e-5)
        assert jnp.allclose(va, ref_va, atol=1e-5, rtol=1e-5)
        assert jnp.allclose(ho, ref_ho, atol=1e-5, rtol=1e-5)

    print("KERNEL_OK")
</pallas_src>

<mosaic_0001>
module attributes {stable_mosaic.version = 11 : i64} {
  func.func @_rac_kernel(%arg0: i32, %arg1: memref<8x256xf32, #tpu.memory_space<vmem>>, %arg2: memref<256x512xf32, #tpu.memory_space<vmem>>, %arg3: memref<1x512xf32, #tpu.memory_space<vmem>>, %arg4: memref<128x128xf32, #tpu.memory_space<vmem>>, %arg5: memref<1x128xf32, #tpu.memory_space<vmem>>, %arg6: memref<8x128xf32, #tpu.memory_space<vmem>>, %arg7: memref<8x128xf32, #tpu.memory_space<vmem>>) attributes {dimension_semantics = [#tpu.dimension_semantics<parallel>], iteration_bounds = array<i64: 1>, scalar_prefetch = 0 : i64, scratch_operands = 0 : i64, tpu.core_type = #tpu.core_type<tc>, window_params = [{transform_indices = @transform_0, window_bounds = array<i64: 8, 256>}, {pipeline_mode = #tpu.pipeline_mode<synchronous>, transform_indices = @transform_1, window_bounds = array<i64: 256, 512>}, {pipeline_mode = #tpu.pipeline_mode<synchronous>, transform_indices = @transform_2, window_bounds = array<i64: 1, 512>}, {pipeline_mode = #tpu.pipeline_mode<synchronous>, transform_indices = @transform_3, window_bounds = array<i64: 128, 128>}, {pipeline_mode = #tpu.pipeline_mode<synchronous>, transform_indices = @transform_4, window_bounds = array<i64: 1, 128>}, {transform_indices = @transform_5, window_bounds = array<i64: 8, 128>}, {transform_indices = @transform_6, window_bounds = array<i64: 8, 128>}]} {
    %c0 = arith.constant 0 : index
    %c0_0 = arith.constant 0 : index
    %0 = vector.load %arg1[%c0, %c0_0] : memref<8x256xf32, #tpu.memory_space<vmem>>, vector<8x256xf32>
    %1 = vector.extract_strided_slice %0 {offsets = [0, 128], sizes = [8, 128], strides = [1, 1]} : vector<8x256xf32> to vector<8x128xf32>
    %c0_1 = arith.constant 0 : index
    %c0_2 = arith.constant 0 : index
    %2 = vector.load %arg2[%c0_1, %c0_2] : memref<256x512xf32, #tpu.memory_space<vmem>>, vector<256x512xf32>
    %cst = arith.constant dense<0.000000e+00> : vector<8x512xf32>
    %3 = tpu.matmul %0, %2, %cst {dimension_numbers = #tpu.dot_dimension_numbers<[1], [0], [0], [1], [0, 0, 1, 1], [], []>} : vector<8x256xf32>, vector<256x512xf32>, vector<8x512xf32> -> vector<8x512xf32>
    %c0_3 = arith.constant 0 : index
    %c0_4 = arith.constant 0 : index
    %4 = vector.load %arg3[%c0_3, %c0_4] : memref<1x512xf32, #tpu.memory_space<vmem>>, vector<1x512xf32>
    %5 = vector.broadcast %4 : vector<1x512xf32> to vector<8x512xf32>
    %6 = arith.addf %3, %5 : vector<8x512xf32>
    %7 = vector.extract_strided_slice %6 {offsets = [0, 0], sizes = [8, 128], strides = [1, 1]} : vector<8x512xf32> to vector<8x128xf32>
    %8 = arith.negf %7 : vector<8x128xf32>
    %9 = math.exp %8 : vector<8x128xf32>
    %cst_5 = arith.constant 1.000000e+00 : f32
    %10 = vector.broadcast %cst_5 : f32 to vector<8x128xf32>
    %11 = arith.addf %10, %9 : vector<8x128xf32>
    %12 = arith.divf %10, %11 : vector<8x128xf32>
    %13 = vector.extract_strided_slice %6 {offsets = [0, 128], sizes = [8, 128], strides = [1, 1]} : vector<8x512xf32> to vector<8x128xf32>
    %14 = arith.negf %13 : vector<8x128xf32>
    %15 = math.exp %14 : vector<8x128xf32>
    %cst_6 = arith.constant 1.000000e+00 : f32
    %16 = vector.broadcast %cst_6 : f32 to vector<8x128xf32>
    %17 = arith.addf %16, %15 : vector<8x128xf32>
    %18 = arith.divf %16, %17 : vector<8x128xf32>
    %19 = vector.extract_strided_slice %6 {offsets = [0, 256], sizes = [8, 128], strides = [1, 1]} : vector<8x512xf32> to vector<8x128xf32>
    %20 = vector.extract_strided_slice %6 {offsets = [0, 384], sizes = [8, 128], strides = [1, 1]} : vector<8x512xf32> to vector<8x128xf32>
    %21 = arith.mulf %12, %20 : vector<8x128xf32>
    %22 = arith.addf %19, %21 : vector<8x128xf32>
    %23 = math.tanh %22 : vector<8x128xf32>
    %cst_7 = arith.constant 1.000000e+00 : f32
    %24 = vector.broadcast %cst_7 : f32 to vector<8x128xf32>
    %25 = arith.subf %24, %18 : vector<8x128xf32>
    %26 = arith.mulf %25, %23 : vector<8x128xf32>
    %27 = arith.mulf %18, %1 : vector<8x128xf32>
    %28 = arith.addf %26, %27 : vector<8x128xf32>
    %c0_8 = arith.constant 0 : index
    %c0_9 = arith.constant 0 : index
    %29 = vector.load %arg7[%c0_8, %c0_9] : memref<8x128xf32, #tpu.memory_space<vmem>>, vector<8x128xf32>
    tpu.vector_store %arg7[%c0_8, %c0_9], %28 {strides = array<i32>} : memref<8x128xf32, #tpu.memory_space<vmem>>, vector<8x128xf32>,
    %c0_10 = arith.constant 0 : index
    %c0_11 = arith.constant 0 : index
    %30 = vector.load %arg4[%c0_10, %c0_11] : memref<128x128xf32, #tpu.memory_space<vmem>>, vector<128x128xf32>
    %cst_12 = arith.constant dense<0.000000e+00> : vector<8x128xf32>
    %31 = tpu.matmul %28, %30, %cst_12 {dimension_numbers = #tpu.dot_dimension_numbers<[1], [0], [0], [1], [0, 0, 1, 1], [], []>} : vector<8x128xf32>, vector<128x128xf32>, vector<8x128xf32> -> vector<8x128xf32>
    %c0_13 = arith.constant 0 : index
    %c0_14 = arith.constant 0 : index
    %32 = vector.load %arg5[%c0_13, %c0_14] : memref<1x128xf32, #tpu.memory_space<vmem>>, vector<1x128xf32>
    %33 = vector.broadcast %32 : vector<1x128xf32> to vector<8x128xf32>
    %34 = arith.addf %31, %33 : vector<8x128xf32>
    %c0_15 = arith.constant 0 : index
    %c0_16 = arith.constant 0 : index
    %35 = vector.load %arg6[%c0_15, %c0_16] : memref<8x128xf32, #tpu.memory_space<vmem>>, vector<8x128xf32>
    tpu.vector_store %arg6[%c0_15, %c0_16], %34 {strides = array<i32>} : memref<8x128xf32, #tpu.memory_space<vmem>>, vector<8x128xf32>,
    return
  }
  func.func @transform_0(%arg0: i32) -> (i32, i32) {
    %c0_i32 = arith.constant 0 : i32
    %c0_i32_0 = arith.constant 0 : i32
    return %arg0, %c0_i32 : i32, i32
  }
  func.func @transform_1(%arg0: i32) -> (i32, i32) {
    %c0_i32 = arith.constant 0 : i32
    %c0_i32_0 = arith.constant 0 : i32
    %c0_i32_1 = arith.constant 0 : i32
    return %c0_i32, %c0_i32_0 : i32, i32
  }
  func.func @transform_2(%arg0: i32) -> (i32, i32) {
    %c0_i32 = arith.constant 0 : i32
    %c0_i32_0 = arith.constant 0 : i32
    %c0_i32_1 = arith.constant 0 : i32
    return %c0_i32, %c0_i32_0 : i32, i32
  }
  func.func @transform_3(%arg0: i32) -> (i32, i32) {
    %c0_i32 = arith.constant 0 : i32
    %c0_i32_0 = arith.constant 0 : i32
    %c0_i32_1 = arith.constant 0 : i32
    return %c0_i32, %c0_i32_0 : i32, i32
  }
  func.func @transform_4(%arg0: i32) -> (i32, i32) {
    %c0_i32 = arith.constant 0 : i32
    %c0_i32_0 = arith.constant 0 : i32
    %c0_i32_1 = arith.constant 0 : i32
    return %c0_i32, %c0_i32_0 : i32, i32
  }
  func.func @transform_5(%arg0: i32) -> (i32, i32) {
    %c0_i32 = arith.constant 0 : i32
    %c0_i32_0 = arith.constant 0 : i32
    return %arg0, %c0_i32 : i32, i32
  }
  func.func @transform_6(%arg0: i32) -> (i32, i32) {
    %c0_i32 = arith.constant 0 : i32
    %c0_i32_0 = arith.constant 0 : i32
    return %arg0, %c0_i32 : i32, i32
  }
}

</mosaic_0001>

<llo_original>
// kernel: tpu_custom_call.1
$region0: #{tpu_custom_call.1}
  #allocation0 [shape = 'u32[]', space=smem, size = 0x4, offset = 0x4, fixed_abs, tag = 'smem constant byte address 0x4 - core index']
  #allocation1 [shape = 'u32[144,128]{1,0:T(1,128)}', space=vmem, size = 0x12000, scoped, tag = 'internal scratch']
  %s0 = inlined_call_operand.hbm [shape: f32[8,256], index: 0, kind: input, shape index: {}]
  %s1 = inlined_call_operand.hbm [shape: f32[256,512], index: 1, kind: input, shape index: {}]
  %s2 = inlined_call_operand.vmem [shape: f32[1,512], index: 2, kind: input, shape index: {}]
  %s3 = inlined_call_operand.hbm [shape: f32[128,128], index: 3, kind: input, shape index: {}]
  %s4 = inlined_call_operand.vmem [shape: f32[1,128], index: 4, kind: input, shape index: {}]
  %s5 = inlined_call_operand.hbm [shape: f32[8,128], index: 5, kind: output, shape index: {0}]
  %s6 = inlined_call_operand.hbm [shape: f32[8,128], index: 6, kind: output, shape index: {1}]
  %7 = xla_tuple %s5, %s6
  %s8 = sld [smem:[#allocation0]]
  $region50: #{tpu_custom_call.1} parent=0
    _
  %s10 = ssub.s32 1, %s8
  %s11 = scalar_select 0, %s10, %s8
  $region1: #{tpu_custom_call.1} parent=0
    #allocation2 [shape = 'u8[8192]{0}', space=vmem, size = 0x2000, scoped, tag = 'input window, operand 0, single buffered']
    #allocation3 [shape = 's32[1]{0}', space=sflag, size = 0x4, scoped, tag = 'scoped memory for tpu_custom_call.1']
    #allocation4 [shape = 's32[1]{0}', space=sflag, size = 0x4, scoped, tag = 'scoped memory for tpu_custom_call.1']
    #allocation5 [shape = 'u8[524288]{0}', space=vmem, size = 0x80000, scoped, tag = 'input window, operand 1, single buffered']
    #allocation6 [shape = 's32[1]{0}', space=sflag, size = 0x4, scoped, tag = 'scoped memory for tpu_custom_call.1']
    #allocation7 [shape = 'u8[65536]{0}', space=vmem, size = 0x10000, scoped, tag = 'input window, operand 3, single buffered']
    #allocation8 [shape = 'u8[4096]{0}', space=vmem, size = 0x1000, scoped, tag = 'output window, operand 0, single buffered']
    #allocation9 [shape = 'u8[4096]{0}', space=vmem, size = 0x1000, scoped, tag = 'output window, operand 1, single buffered']
    #allocation10 [shape = 's32[1]{0}', space=sflag, size = 0x4, scoped, tag = 'scoped memory for tpu_custom_call.1']
    %12 = vsyncpa [#allocation3], 0
    %13 = vsyncpa [#allocation6], 0
    %14 = vsyncpa [#allocation4], 0
    %15 = vsyncpa [#allocation10], 0
    // Predicated region
    $region2: #{tpu_custom_call.1} parent=1 // pred_check
      _
    $region3: #{tpu_custom_call.1} parent=1 // pred_check_branch
      %17 = sbr.rel (0) target = $region5
    $region4: #{tpu_custom_call.1} parent=1 // pred_region
      %s19 = ssub.s32 256, 256
      %20 = vsyncadd [#allocation3], %s19
      %s22 = sshll.u32 [#allocation2], 4
      %s23 = int_to_ptr.vmem [resolvable:$true] %s22
      %25 = dma.hbm_to_vmem [thread:$0]  %s0, 256, %s23, [#allocation3]
    $region5: #{tpu_custom_call.1} parent=1 // pred_fallthru
      _
    // Predicated region
    $region6: #{tpu_custom_call.1} parent=1 // pred_check
      _
    $region7: #{tpu_custom_call.1} parent=1 // pred_check_branch
      %27 = sbr.rel (0) target = $region9
    $region8: #{tpu_custom_call.1} parent=1 // pred_region
      %s29 = ssub.s32 16384, 16384
      %30 = vsyncadd [#allocation6], %s29
      %s31 = sshll.u32 [#allocation5], 4
      %s32 = int_to_ptr.vmem [resolvable:$true] %s31
      %37 = dma.hbm_to_vmem [thread:$0]  %s1, 16384, %s32, [#allocation6], 512, 512, 32
    $region9: #{tpu_custom_call.1} parent=1 // pred_fallthru
      _
    // Predicated region
    $region10: #{tpu_custom_call.1} parent=1 // pred_check
      _
    $region11: #{tpu_custom_call.1} parent=1 // pred_check_branch
      %39 = sbr.rel (0) target = $region13
    $region12: #{tpu_custom_call.1} parent=1 // pred_region
      _
    $region13: #{tpu_custom_call.1} parent=1 // pred_fallthru
      _
    // Predicated region
    $region14: #{tpu_custom_call.1} parent=1 // pred_check
      _
    $region15: #{tpu_custom_call.1} parent=1 // pred_check_branch
      %41 = sbr.rel (0) target = $region17
    $region16: #{tpu_custom_call.1} parent=1 // pred_region
      %s43 = ssub.s32 2048, 2048
      %44 = vsyncadd [#allocation6], %s43
      %s45 = sshll.u32 [#allocation7], 4
      %s46 = int_to_ptr.vmem [resolvable:$true] %s45
      %51 = dma.hbm_to_vmem [thread:$0]  %s3, 2048, %s46, [#allocation6], 128, 128, 8
    $region17: #{tpu_custom_call.1} parent=1 // pred_fallthru
      _
    // Predicated region
    $region18: #{tpu_custom_call.1} parent=1 // pred_check
      _
    $region19: #{tpu_custom_call.1} parent=1 // pred_check_branch
      %53 = sbr.rel (0) target = $region21
    $region20: #{tpu_custom_call.1} parent=1 // pred_region
      _
    $region21: #{tpu_custom_call.1} parent=1 // pred_fallthru
      _
    // Predicated region
    $region22: #{tpu_custom_call.1} parent=1 // pred_check
      _
    $region23: #{tpu_custom_call.1} parent=1 // pred_check_branch
      %55 = sbr.rel (0) target = $region25
    $region24: #{tpu_custom_call.1} parent=1 // pred_region
      %56 = dma.done [#allocation3], 256
    $region25: #{tpu_custom_call.1} parent=1 // pred_fallthru
      _
    // Predicated region
    $region26: #{tpu_custom_call.1} parent=1 // pred_check
      _
    $region27: #{tpu_custom_call.1} parent=1 // pred_check_branch
      %58 = sbr.rel (0) target = $region29
    $region28: #{tpu_custom_call.1} parent=1 // pred_region
      %59 = dma.done [#allocation6], 16384
    $region29: #{tpu_custom_call.1} parent=1 // pred_fallthru
      _
    // Predicated region
    $region30: #{tpu_custom_call.1} parent=1 // pred_check
      _
    $region31: #{tpu_custom_call.1} parent=1 // pred_check_branch
      %61 = sbr.rel (0) target = $region33
    $region32: #{tpu_custom_call.1} parent=1 // pred_region
      %62 = dma.done [#allocation6], 2048
    $region33: #{tpu_custom_call.1} parent=1 // pred_fallthru
      _
    %v63 = vld [vmem:[#allocation2] sm:$0xff]
    %v64 = vld [vmem:[#allocation2 + $0x8] sm:$0xff]
    %v65 = vld [vmem:[#allocation5] sm:$0xff]
    %v66 = vld [vmem:[#allocation5 + $0x8] sm:$0xff]
    %v67 = vld [vmem:[#allocation5 + $0x10] sm:$0xff]
    %v68 = vld [vmem:[#allocation5 + $0x18] sm:$0xff]
    %v69 = vld [vmem:[#allocation5 + $0x20] sm:$0xff]
    %v70 = vld [vmem:[#allocation5 + $0x28] sm:$0xff]
    %v71 = vld [vmem:[#allocation5 + $0x30] sm:$0xff]
    %v72 = vld [vmem:[#allocation5 + $0x38] sm:$0xff]
    %v73 = vld [vmem:[#allocation5 + $0x40] sm:$0xff]
    %v74 = vld [vmem:[#allocation5 + $0x48] sm:$0xff]
    %v75 = vld [vmem:[#allocation5 + $0x50] sm:$0xff]
    %v76 = vld [vmem:[#allocation5 + $0x58] sm:$0xff]
    %v77 = vld [vmem:[#allocation5 + $0x60] sm:$0xff]
    %v78 = vld [vmem:[#allocation5 + $0x68] sm:$0xff]
    %v79 = vld [vmem:[#allocation5 + $0x70] sm:$0xff]
    %v80 = vld [vmem:[#allocation5 + $0x78] sm:$0xff]
    %v81 = vld [vmem:[#allocation5 + $0x80] sm:$0xff]
    %v82 = vld [vmem:[#allocation5 + $0x88] sm:$0xff]
    %v83 = vld [vmem:[#allocation5 + $0x90] sm:$0xff]
    %v84 = vld [vmem:[#allocation5 + $0x98] sm:$0xff]
    %v85 = vld [vmem:[#allocation5 + $0xa0] sm:$0xff]
    %v86 = vld [vmem:[#allocation5 + $0xa8] sm:$0xff]
    %v87 = vld [vmem:[#allocation5 + $0xb0] sm:$0xff]
    %v88 = vld [vmem:[#allocation5 + $0xb8] sm:$0xff]
    %v89 = vld [vmem:[#allocation5 + $0xc0] sm:$0xff]
    %v90 = vld [vmem:[#allocation5 + $0xc8] sm:$0xff]
    %v91 = vld [vmem:[#allocation5 + $0xd0] sm:$0xff]
    %v92 = vld [vmem:[#allocation5 + $0xd8] sm:$0xff]
    %v93 = vld [vmem:[#allocation5 + $0xe0] sm:$0xff]
    %v94 = vld [vmem:[#allocation5 + $0xe8] sm:$0xff]
    %v95 = vld [vmem:[#allocation5 + $0xf0] sm:$0xff]
    %v96 = vld [vmem:[#allocation5 + $0xf8] sm:$0xff]
    %v97 = vld [vmem:[#allocation5 + $0x100] sm:$0xff]
    %v98 = vld [vmem:[#allocation5 + $0x108] sm:$0xff]
    %v99 = vld [vmem:[#allocation5 + $0x110] sm:$0xff]
    %v100 = vld [vmem:[#allocation5 + $0x118] sm:$0xff]
    %v101 = vld [vmem:[#allocation5 + $0x120] sm:$0xff]
    %v102 = vld [vmem:[#allocation5 + $0x128] sm:$0xff]
    %v103 = vld [vmem:[#allocation5 + $0x130] sm:$0xff]
    %v104 = vld [vmem:[#allocation5 + $0x138] sm:$0xff]
    %v105 = vld [vmem:[#allocation5 + $0x140] sm:$0xff]
    %v106 = vld [vmem:[#allocation5 + $0x148] sm:$0xff]
    %v107 = vld [vmem:[#allocation5 + $0x150] sm:$0xff]
    %v108 = vld [vmem:[#allocation5 + $0x158] sm:$0xff]
    %v109 = vld [vmem:[#allocation5 + $0x160] sm:$0xff]
    %v110 = vld [vmem:[#allocation5 + $0x168] sm:$0xff]
    %v111 = vld [vmem:[#allocation5 + $0x170] sm:$0xff]
    %v112 = vld [vmem:[#allocation5 + $0x178] sm:$0xff]
    %v113 = vld [vmem:[#allocation5 + $0x180] sm:$0xff]
    %v114 = vld [vmem:[#allocation5 + $0x188] sm:$0xff]
    %v115 = vld [vmem:[#allocation5 + $0x190] sm:$0xff]
    %v116 = vld [vmem:[#allocation5 + $0x198] sm:$0xff]
    %v117 = vld [vmem:[#allocation5 + $0x1a0] sm:$0xff]
    %v118 = vld [vmem:[#allocation5 + $0x1a8] sm:$0xff]
    %v119 = vld [vmem:[#allocation5 + $0x1b0] sm:$0xff]
    %v120 = vld [vmem:[#allocation5 + $0x1b8] sm:$0xff]
    %v121 = vld [vmem:[#allocation5 + $0x1c0] sm:$0xff]
    %v122 = vld [vmem:[#allocation5 + $0x1c8] sm:$0xff]
    %v123 = vld [vmem:[#allocation5 + $0x1d0] sm:$0xff]
    %v124 = vld [vmem:[#allocation5 + $0x1d8] sm:$0xff]
    %v125 = vld [vmem:[#allocation5 + $0x1e0] sm:$0xff]
    %v126 = vld [vmem:[#allocation5 + $0x1e8] sm:$0xff]
    %v127 = vld [vmem:[#allocation5 + $0x1f0] sm:$0xff]
    %v128 = vld [vmem:[#allocation5 + $0x1f8] sm:$0xff]
    %v129 = vld [vmem:[#allocation5 + $0x200] sm:$0xff]
    %v130 = vld [vmem:[#allocation5 + $0x208] sm:$0xff]
    %v131 = vld [vmem:[#allocation5 + $0x210] sm:$0xff]
    %v132 = vld [vmem:[#allocation5 + $0x218] sm:$0xff]
    %v133 = vld [vmem:[#allocation5 + $0x220] sm:$0xff]
    %v134 = vld [vmem:[#allocation5 + $0x228] sm:$0xff]
    %v135 = vld [vmem:[#allocation5 + $0x230] sm:$0xff]
    %v136 = vld [vmem:[#allocation5 + $0x238] sm:$0xff]
    %v137 = vld [vmem:[#allocation5 + $0x240] sm:$0xff]
    %v138 = vld [vmem:[#allocation5 + $0x248] sm:$0xff]
    %v139 = vld [vmem:[#allocation5 + $0x250] sm:$0xff]
    %v140 = vld [vmem:[#allocation5 + $0x258] sm:$0xff]
    %v141 = vld [vmem:[#allocation5 + $0x260] sm:$0xff]
    %v142 = vld [vmem:[#allocation5 + $0x268] sm:$0xff]
    %v143 = vld [vmem:[#allocation5 + $0x270] sm:$0xff]
    %v144 = vld [vmem:[#allocation5 + $0x278] sm:$0xff]
    %v145 = vld [vmem:[#allocation5 + $0x280] sm:$0xff]
    %v146 = vld [vmem:[#allocation5 + $0x288] sm:$0xff]
    %v147 = vld [vmem:[#allocation5 + $0x290] sm:$0xff]
    %v148 = vld [vmem:[#allocation5 + $0x298] sm:$0xff]
    %v149 = vld [vmem:[#allocation5 + $0x2a0] sm:$0xff]
    %v150 = vld [vmem:[#allocation5 + $0x2a8] sm:$0xff]
    %v151 = vld [vmem:[#allocation5 + $0x2b0] sm:$0xff]
    %v152 = vld [vmem:[#allocation5 + $0x2b8] sm:$0xff]
    %v153 = vld [vmem:[#allocation5 + $0x2c0] sm:$0xff]
    %v154 = vld [vmem:[#allocation5 + $0x2c8] sm:$0xff]
    %v155 = vld [vmem:[#allocation5 + $0x2d0] sm:$0xff]
    %v156 = vld [vmem:[#allocation5 + $0x2d8] sm:$0xff]
    %v157 = vld [vmem:[#allocation5 + $0x2e0] sm:$0xff]
    %v158 = vld [vmem:[#allocation5 + $0x2e8] sm:$0xff]
    %v159 = vld [vmem:[#allocation5 + $0x2f0] sm:$0xff]
    %v160 = vld [vmem:[#allocation5 + $0x2f8] sm:$0xff]
    %v161 = vld [vmem:[#allocation5 + $0x300] sm:$0xff]
    %v162 = vld [vmem:[#allocation5 + $0x308] sm:$0xff]
    %v163 = vld [vmem:[#allocation5 + $0x310] sm:$0xff]
    %v164 = vld [vmem:[#allocation5 + $0x318] sm:$0xff]
    %v165 = vld [vmem:[#allocation5 + $0x320] sm:$0xff]
    %v166 = vld [vmem:[#allocation5 + $0x328] sm:$0xff]
    %v167 = vld [vmem:[#allocation5 + $0x330] sm:$0xff]
    %v168 = vld [vmem:[#allocation5 + $0x338] sm:$0xff]
    %v169 = vld [vmem:[#allocation5 + $0x340] sm:$0xff]
    %v170 = vld [vmem:[#allocation5 + $0x348] sm:$0xff]
    %v171 = vld [vmem:[#allocation5 + $0x350] sm:$0xff]
    %v172 = vld [vmem:[#allocation5 + $0x358] sm:$0xff]
    %v173 = vld [vmem:[#allocation5 + $0x360] sm:$0xff]
    %v174 = vld [vmem:[#allocation5 + $0x368] sm:$0xff]
    %v175 = vld [vmem:[#allocation5 + $0x370] sm:$0xff]
    %v176 = vld [vmem:[#allocation5 + $0x378] sm:$0xff]
    %v177 = vld [vmem:[#allocation5 + $0x380] sm:$0xff]
    %v178 = vld [vmem:[#allocation5 + $0x388] sm:$0xff]
    %v179 = vld [vmem:[#allocation5 + $0x390] sm:$0xff]
    %v180 = vld [vmem:[#allocation5 + $0x398] sm:$0xff]
    %v181 = vld [vmem:[#allocation5 + $0x3a0] sm:$0xff]
    %v182 = vld [vmem:[#allocation5 + $0x3a8] sm:$0xff]
    %v183 = vld [vmem:[#allocation5 + $0x3b0] sm:$0xff]
    %v184 = vld [vmem:[#allocation5 + $0x3b8] sm:$0xff]
    %v185 = vld [vmem:[#allocation5 + $0x3c0] sm:$0xff]
    %v186 = vld [vmem:[#allocation5 + $0x3c8] sm:$0xff]
    %v187 = vld [vmem:[#allocation5 + $0x3d0] sm:$0xff]
    %v188 = vld [vmem:[#allocation5 + $0x3d8] sm:$0xff]
    %v189 = vld [vmem:[#allocation5 + $0x3e0] sm:$0xff]
    %v190 = vld [vmem:[#allocation5 + $0x3e8] sm:$0xff]
    %v191 = vld [vmem:[#allocation5 + $0x3f0] sm:$0xff]
    %v192 = vld [vmem:[#allocation5 + $0x3f8] sm:$0xff]
    %v193 = vld [vmem:[%s2] sm:$0xf]
    %v195 = vlaneseq
    %v196 = vshrl.u32 %v195, 7
    %v197 = vsub.s32 0, %v196
    %v198 = vrot.slane %v193, %v197
    %v199 = vlaneseq
    %v200 = vshrl.u32 %v199, 7
    %v201 = vsub.s32 1, %v200
    %v202 = vrot.slane %v193, %v201
    %v203 = vlaneseq
    %v204 = vshrl.u32 %v203, 7
    %v205 = vsub.s32 2, %v204
    %v206 = vrot.slane %v193, %v205
    %v207 = vlaneseq
    %v208 = vshrl.u32 %v207, 7
    %v209 = vsub.s32 3, %v208
    %v210 = vrot.slane %v193, %v209
    %215 = vmatprep.subr.mxu0 %v66
    %216 = vmatpush1.msra.mxu0 %v65
    %217 = vmatprep.subr.mxu0 %v70
    %218 = vmatpush1.msra.mxu0 %v69
    %219 = vmatprep.subr.mxu0 %v74
    %220 = vmatpush1.msra.mxu0 %v73
    %221 = vmatprep.subr.mxu0 %v78
    %222 = vmatpush1.msra.mxu0 %v77
    %223 = vmatprep.subr.mxu0 %v82
    %224 = vmatpush1.msra.mxu0 %v81
    %225 = vmatprep.subr.mxu0 %v86
    %226 = vmatpush1.msra.mxu0 %v85
    %227 = vmatprep.subr.mxu0 %v90
    %228 = vmatpush1.msra.mxu0 %v89
    %229 = vmatprep.subr.mxu0 %v94
    %230 = vmatpush1.msra.mxu0 %v93
    %231 = vmatprep.subr.mxu0 %v98
    %232 = vmatpush1.msra.mxu0 %v97
    %233 = vmatprep.subr.mxu0 %v102
    %234 = vmatpush1.msra.mxu0 %v101
    %235 = vmatprep.subr.mxu0 %v106
    %236 = vmatpush1.msra.mxu0 %v105
    %237 = vmatprep.subr.mxu0 %v110
    %238 = vmatpush1.msra.mxu0 %v109
    %239 = vmatprep.subr.mxu0 %v114
    %240 = vmatpush1.msra.mxu0 %v113
    %241 = vmatprep.subr.mxu0 %v118
    %242 = vmatpush1.msra.mxu0 %v117
    %243 = vmatprep.subr.mxu0 %v122
    %244 = vmatpush1.msra.mxu0 %v121
    %245 = vmatprep.subr.mxu0 %v126
    %246 = vmatpush1.msra.mxu0 %v125
    %247 = vmatprep.subr.mxu0 %v130
    %248 = vmatpush1.msra.mxu0 %v129
    %249 = vmatprep.subr.mxu0 %v134
    %250 = vmatpush1.msra.mxu0 %v133
    %251 = vmatprep.subr.mxu0 %v138
    %252 = vmatpush1.msra.mxu0 %v137
    %253 = vmatprep.subr.mxu0 %v142
    %254 = vmatpush1.msra.mxu0 %v141
    %255 = vmatprep.subr.mxu0 %v146
    %256 = vmatpush1.msra.mxu0 %v145
    %257 = vmatprep.subr.mxu0 %v150
    %258 = vmatpush1.msra.mxu0 %v149
    %259 = vmatprep.subr.mxu0 %v154
    %260 = vmatpush1.msra.mxu0 %v153
    %261 = vmatprep.subr.mxu0 %v158
    %262 = vmatpush1.msra.mxu0 %v157
    %263 = vmatprep.subr.mxu0 %v162
    %264 = vmatpush1.msra.mxu0 %v161
    %265 = vmatprep.subr.mxu0 %v166
    %266 = vmatpush1.msra.mxu0 %v165
    %267 = vmatprep.subr.mxu0 %v170
    %268 = vmatpush1.msra.mxu0 %v169
    %269 = vmatprep.subr.mxu0 %v174
    %270 = vmatpush1.msra.mxu0 %v173
    %271 = vmatprep.subr.mxu0 %v178
    %272 = vmatpush1.msra.mxu0 %v177
    %273 = vmatprep.subr.mxu0 %v182
    %274 = vmatpush1.msra.mxu0 %v181
    %275 = vmatprep.subr.mxu0 %v186
    %276 = vmatpush1.msra.mxu0 %v185
    %277 = vmatprep.subr.mxu0 %v190
    %278 = vmatpush1.msra.mxu0 %v189
    %279 = vmatprep.mubr.f32.mxu0 %v64
    %280 = vmatmul.mubr.f32.gmra.mrb[0].mxu0 %v63
    %v281 = vpop.f32.mrb[0].mxu0
    %v282 = vadd.f32 %v198, %v281
    %v283 = vpop.f32.mrb[0].mxu0
    %v284 = vadd.f32 %v202, %v283
    %285 = vdwg.mxu0
    %286 = vmatprep.subr.mxu0 %v68
    %287 = vmatpush1.msra.mxu0 %v67
    %288 = vmatprep.subr.mxu0 %v72
    %289 = vmatpush1.msra.mxu0 %v71
    %290 = vmatprep.subr.mxu0 %v76
    %291 = vmatpush1.msra.mxu0 %v75
    %292 = vmatprep.subr.mxu0 %v80
    %293 = vmatpush1.msra.mxu0 %v79
    %294 = vmatprep.subr.mxu0 %v84
    %295 = vmatpush1.msra.mxu0 %v83
    %296 = vmatprep.subr.mxu0 %v88
    %297 = vmatpush1.msra.mxu0 %v87
    %298 = vmatprep.subr.mxu0 %v92
    %299 = vmatpush1.msra.mxu0 %v91
    %300 = vmatprep.subr.mxu0 %v96
    %301 = vmatpush1.msra.mxu0 %v95
    %302 = vmatprep.subr.mxu0 %v100
    %303 = vmatpush1.msra.mxu0 %v99
    %304 = vmatprep.subr.mxu0 %v104
    %305 = vmatpush1.msra.mxu0 %v103
    %306 = vmatprep.subr.mxu0 %v108
    %307 = vmatpush1.msra.mxu0 %v107
    %308 = vmatprep.subr.mxu0 %v112
    %309 = vmatpush1.msra.mxu0 %v111
    %310 = vmatprep.subr.mxu0 %v116
    %311 = vmatpush1.msra.mxu0 %v115
    %312 = vmatprep.subr.mxu0 %v120
    %313 = vmatpush1.msra.mxu0 %v119
    %314 = vmatprep.subr.mxu0 %v124
    %315 = vmatpush1.msra.mxu0 %v123
    %316 = vmatprep.subr.mxu0 %v128
    %317 = vmatpush1.msra.mxu0 %v127
    %318 = vmatprep.subr.mxu0 %v132
    %319 = vmatpush1.msra.mxu0 %v131
    %320 = vmatprep.subr.mxu0 %v136
    %321 = vmatpush1.msra.mxu0 %v135
    %322 = vmatprep.subr.mxu0 %v140
    %323 = vmatpush1.msra.mxu0 %v139
    %324 = vmatprep.subr.mxu0 %v144
    %325 = vmatpush1.msra.mxu0 %v143
    %326 = vmatprep.subr.mxu0 %v148
    %327 = vmatpush1.msra.mxu0 %v147
    %328 = vmatprep.subr.mxu0 %v152
    %329 = vmatpush1.msra.mxu0 %v151
    %330 = vmatprep.subr.mxu0 %v156
    %331 = vmatpush1.msra.mxu0 %v155
    %332 = vmatprep.subr.mxu0 %v160
    %333 = vmatpush1.msra.mxu0 %v159
    %334 = vmatprep.subr.mxu0 %v164
    %335 = vmatpush1.msra.mxu0 %v163
    %336 = vmatprep.subr.mxu0 %v168
    %337 = vmatpush1.msra.mxu0 %v167
    %338 = vmatprep.subr.mxu0 %v172
    %339 = vmatpush1.msra.mxu0 %v171
    %340 = vmatprep.subr.mxu0 %v176
    %341 = vmatpush1.msra.mxu0 %v175
    %342 = vmatprep.subr.mxu0 %v180
    %343 = vmatpush1.msra.mxu0 %v179
    %344 = vmatprep.subr.mxu0 %v184
    %345 = vmatpush1.msra.mxu0 %v183
    %346 = vmatprep.subr.mxu0 %v188
    %347 = vmatpush1.msra.mxu0 %v187
    %348 = vmatprep.subr.mxu0 %v192
    %349 = vmatpush1.msra.mxu0 %v191
    %350 = vmatprep.mubr.f32.mxu0 %v64
    %351 = vmatmul.mubr.f32.gmra.mrb[0].mxu0 %v63
    %v352 = vpop.f32.mrb[0].mxu0
    %v353 = vadd.f32 %v206, %v352
    %v354 = vpop.f32.mrb[0].mxu0
    %v355 = vadd.f32 %v210, %v354
    %356 = vdwg.mxu0
    %v357 = vxor.u32 %v282, 2147483648
    %v358 = vmul.f32 %v357, 1.442695
    %v359 = vpow.pop %v358
    %v360 = vadd.f32 %v359, 1.0
    %v361 = vrcp.pop %v360
    %v362 = vmul.f32 1.0, %v361
    %v363 = vxor.u32 %v284, 2147483648
    %v364 = vmul.f32 %v363, 1.442695
    %v365 = vpow.pop %v364
    %v366 = vadd.f32 %v365, 1.0
    %v367 = vrcp.pop %v366
    %v368 = vmul.f32 1.0, %v367
    %v369 = vmul.f32 %v362, %v355
    %v370 = vadd.f32 %v353, %v369
    %v371 = vtanh.pop %v370
    %v372 = vsub.f32 1.0, %v368
    %v373 = vmul.f32 %v372, %v371
    %v374 = vmul.f32 %v368, %v64
    %v375 = vadd.f32 %v373, %v374
    %376 = vst [vmem:[#allocation9] sm:$0xff] %v375
    %v377 = vld [vmem:[#allocation7] sm:$0xff]
    %v378 = vld [vmem:[#allocation7 + $0x8] sm:$0xff]
    %v379 = vld [vmem:[#allocation7 + $0x10] sm:$0xff]
    %v380 = vld [vmem:[#allocation7 + $0x18] sm:$0xff]
    %v381 = vld [vmem:[#allocation7 + $0x20] sm:$0xff]
    %v382 = vld [vmem:[#allocation7 + $0x28] sm:$0xff]
    %v383 = vld [vmem:[#allocation7 + $0x30] sm:$0xff]
    %v384 = vld [vmem:[#allocation7 + $0x38] sm:$0xff]
    %v385 = vld [vmem:[#allocation7 + $0x40] sm:$0xff]
    %v386 = vld [vmem:[#allocation7 + $0x48] sm:$0xff]
    %v387 = vld [vmem:[#allocation7 + $0x50] sm:$0xff]
    %v388 = vld [vmem:[#allocation7 + $0x58] sm:$0xff]
    %v389 = vld [vmem:[#allocation7 + $0x60] sm:$0xff]
    %v390 = vld [vmem:[#allocation7 + $0x68] sm:$0xff]
    %v391 = vld [vmem:[#allocation7 + $0x70] sm:$0xff]
    %v392 = vld [vmem:[#allocation7 + $0x78] sm:$0xff]
    %v393 = vld [vmem:[%s4] sm:$0x1]
    %v395 = vlaneseq
    %v396 = vshrl.u32 %v395, 7
    %v397 = vsub.s32 0, %v396
    %v398 = vrot.slane %v393, %v397
    %400 = vmatprep.subr.mxu0 0.0
    %401 = vmatpush1.msra.mxu0 %v377
    %402 = vmatprep.subr.mxu0 0.0
    %403 = vmatpush1.msra.mxu0 %v378
    %404 = vmatprep.subr.mxu0 0.0
    %405 = vmatpush1.msra.mxu0 %v379
    %406 = vmatprep.subr.mxu0 0.0
    %407 = vmatpush1.msra.mxu0 %v380
    %408 = vmatprep.subr.mxu0 0.0
    %409 = vmatpush1.msra.mxu0 %v381
    %410 = vmatprep.subr.mxu0 0.0
    %411 = vmatpush1.msra.mxu0 %v382
    %412 = vmatprep.subr.mxu0 0.0
    %413 = vmatpush1.msra.mxu0 %v383
    %414 = vmatprep.subr.mxu0 0.0
    %415 = vmatpush1.msra.mxu0 %v384
    %416 = vmatprep.subr.mxu0 0.0
    %417 = vmatpush1.msra.mxu0 %v385
    %418 = vmatprep.subr.mxu0 0.0
    %419 = vmatpush1.msra.mxu0 %v386
    %420 = vmatprep.subr.mxu0 0.0
    %421 = vmatpush1.msra.mxu0 %v387
    %422 = vmatprep.subr.mxu0 0.0
    %423 = vmatpush1.msra.mxu0 %v388
    %424 = vmatprep.subr.mxu0 0.0
    %425 = vmatpush1.msra.mxu0 %v389
    %426 = vmatprep.subr.mxu0 0.0
    %427 = vmatpush1.msra.mxu0 %v390
    %428 = vmatprep.subr.mxu0 0.0
    %429 = vmatpush1.msra.mxu0 %v391
    %430 = vmatprep.subr.mxu0 0.0
    %431 = vmatpush1.msra.mxu0 %v392
    %432 = vmatprep.subr.mxu0 0.0
    %433 = vmatpush1.msra.mxu0 0.0
    %434 = vmatprep.subr.mxu0 0.0
    %435 = vmatpush1.msra.mxu0 0.0
    %436 = vmatprep.subr.mxu0 0.0
    %437 = vmatpush1.msra.mxu0 0.0
    %438 = vmatprep.subr.mxu0 0.0
    %439 = vmatpush1.msra.mxu0 0.0
    %440 = vmatprep.subr.mxu0 0.0
    %441 = vmatpush1.msra.mxu0 0.0
    %442 = vmatprep.subr.mxu0 0.0
    %443 = vmatpush1.msra.mxu0 0.0
    %444 = vmatprep.subr.mxu0 0.0
    %445 = vmatpush1.msra.mxu0 0.0
    %446 = vmatprep.subr.mxu0 0.0
    %447 = vmatpush1.msra.mxu0 0.0
    %448 = vmatprep.subr.mxu0 0.0
    %449 = vmatpush1.msra.mxu0 0.0
    %450 = vmatprep.subr.mxu0 0.0
    %451 = vmatpush1.msra.mxu0 0.0
    %452 = vmatprep.subr.mxu0 0.0
    %453 = vmatpush1.msra.mxu0 0.0
    %454 = vmatprep.subr.mxu0 0.0
    %455 = vmatpush1.msra.mxu0 0.0
    %456 = vmatprep.subr.mxu0 0.0
    %457 = vmatpush1.msra.mxu0 0.0
    %458 = vmatprep.subr.mxu0 0.0
    %459 = vmatpush1.msra.mxu0 0.0
    %460 = vmatprep.subr.mxu0 0.0
    %461 = vmatpush1.msra.mxu0 0.0
    %462 = vmatprep.subr.mxu0 0.0
    %463 = vmatpush1.msra.mxu0 0.0
    %464 = vmatprep.mubr.f32.mxu0 0.0
    %465 = vmatmul.mubr.f32.gmra.mrb[0].mxu0 %v375
    %v466 = vpop.f32.mrb[0].mxu0
    %v467 = vadd.f32 %v398, %v466
    %v468 = vpop.f32.mrb[0].mxu0
    %469 = vdwg.mxu0
    %470 = vst [vmem:[#allocation8] sm:$0xff] %v467
    // Predicated region
    $region34: #{tpu_custom_call.1} parent=1 // pred_check
      _
    $region35: #{tpu_custom_call.1} parent=1 // pred_check_branch
      %472 = sbr.rel (0) target = $region37
    $region36: #{tpu_custom_call.1} parent=1 // pred_region
      %s474 = ssub.s32 128, 128
      %475 = vsyncadd [#allocation4], %s474
      %s477 = sshll.u32 [#allocation8], 4
      %s478 = int_to_ptr.vmem [resolvable:$true] %s477
      %480 = dma.vmem_to_hbm [thread:$0]  %s478, 128, %s5, [#allocation4]
    $region37: #{tpu_custom_call.1} parent=1 // pred_fallthru
      _
    // Predicated region
    $region38: #{tpu_custom_call.1} parent=1 // pred_check
      _
    $region39: #{tpu_custom_call.1} parent=1 // pred_check_branch
      %482 = sbr.rel (0) target = $region41
    $region40: #{tpu_custom_call.1} parent=1 // pred_region
      %s484 = ssub.s32 128, 128
      %485 = vsyncadd [#allocation10], %s484
      %s487 = sshll.u32 [#allocation9], 4
      %s488 = int_to_ptr.vmem [resolvable:$true] %s487
      %490 = dma.vmem_to_hbm [thread:$0]  %s488, 128, %s6, [#allocation10]
    $region41: #{tpu_custom_call.1} parent=1 // pred_fallthru
      _
    // Predicated region
    $region42: #{tpu_custom_call.1} parent=1 // pred_check
      _
    $region43: #{tpu_custom_call.1} parent=1 // pred_check_branch
      %492 = sbr.rel (0) target = $region45
    $region44: #{tpu_custom_call.1} parent=1 // pred_region
      %493 = dma.done [#allocation4], 128
    $region45: #{tpu_custom_call.1} parent=1 // pred_fallthru
      _
    // Predicated region
    $region46: #{tpu_custom_call.1} parent=1 // pred_check
      _
    $region47: #{tpu_custom_call.1} parent=1 // pred_check_branch
      %495 = sbr.rel (0) target = $region49
    $region48: #{tpu_custom_call.1} parent=1 // pred_region
      %496 = dma.done [#allocation10], 128
    $region49: #{tpu_custom_call.1} parent=1 // pred_fallthru
      _
    %497 = vsyncpa [#allocation3], 1
    %498 = vsyncpa [#allocation6], 1
    %499 = vsyncpa [#allocation4], 1
    %500 = vsyncpa [#allocation10], 1

</llo_original>
